<compile_context>
chip_gen: v7x
topology: tpu7x:2x2x1
jax: 0.10.0
libtpu: 0.0.40
codegen_flags: <defaults>
</compile_context>

<pallas_src>
import functools

import jax
import jax.numpy as jnp
from jax import lax
from jax.experimental import pallas as pl
from jax.experimental.pallas import tpu as pltpu


# ----------------------------------------------------------------------------
# Kernel 1: router logits, tiled over tokens (parallel axis).
#   sel_raw = x @ W_sel.T     (bf16 MXU inputs, f32 accumulation)
# ----------------------------------------------------------------------------
def router_kernel(x_ref, wsel_t_ref, sel_ref):
    sel_ref[...] = jnp.dot(x_ref[...], wsel_t_ref[...],
                           preferred_element_type=jnp.float32)


# ----------------------------------------------------------------------------
# Kernel 2: expert MLP, one grid step per token tile, all experts in-kernel.
#   out[t] = sum_e gate[t, e] * relu(x[t] @ K_e) @ V_e
# Experts are pre-grouped along the matmul N dim (group * expert_size lanes),
# weights are VMEM-resident (constant index_map), gate arrives as [E, tm, 1].
# ----------------------------------------------------------------------------
def moe_kernel(x_ref, kg_ref, vg_ref, gate_ref, o_ref, *, group, expert_size):
    x = x_ref[...]                                    # [tm, D] bf16
    tm = x.shape[0]
    n_groups = kg_ref.shape[0]
    acc = jnp.zeros((tm, o_ref.shape[-1]), jnp.float32)

    for g in range(n_groups):                         # short static unroll
        # relu(x @ [K_{gG} | ... | K_{gG+G-1}])  -> [tm, G*expert_size]
        scores = jnp.dot(x, kg_ref[g], preferred_element_type=jnp.float32)
        scores = jnp.maximum(scores, 0.0)
        # per-expert gate columns, lane-broadcast over each expert's slice
        gate = jnp.concatenate(
            [jnp.broadcast_to(gate_ref[g * group + j], (tm, expert_size))
             for j in range(group)],
            axis=-1)                                   # [tm, G*expert_size]
        scores = scores * gate
        acc = acc + jnp.dot(scores.astype(vg_ref.dtype), vg_ref[g],
                            preferred_element_type=jnp.float32)

    o_ref[...] = acc.astype(o_ref.dtype)


# ----------------------------------------------------------------------------
# Wrapper
# ----------------------------------------------------------------------------
def _pick_expert_group(n_experts, expert_size):
    """Merge experts along the matmul N dim (up to 512 lanes / group)."""
    if expert_size % 128 != 0:
        return 1
    g = 1
    while (g * 2 <= n_experts and n_experts % (g * 2) == 0
           and (g * 2) * expert_size <= 512):
        g *= 2
    return g


def sigma_moe_forward(x, w_sel, keys, values, k):
    """x: [bsz, seq, d_model]; w_sel: [n_experts, d_model];
    keys: [n_experts, d_model, expert_size]; values: [n_experts, expert_size, v_dim]."""
    bsz, seq, d_model = x.shape
    n_experts, _, expert_size = keys.shape
    v_dim = values.shape[-1]
    T = bsz * seq

    # Token tile: single tile for small T (full-dim block), else 512 rows.
    tm = T if T <= 512 else 512
    n_tiles = pl.cdiv(T, tm)

    # Single bf16 copy of x, shared by router and MoE kernels (f32 accumulation
    # in-kernel).  No jnp.pad: ragged last tiles are masked by Pallas.
    x_bf = x.reshape(T, d_model).astype(jnp.bfloat16)
    wsel_t = jnp.transpose(w_sel).astype(jnp.bfloat16)            # [D, E]

    # Comfortable on every generation (v7x physical VMEM is 64 MiB).
    vmem_limit = 32 * 1024 * 1024

    # --- router logits (Pallas, parallel token tiles, bf16 MXU) ---
    sel_raw = pl.pallas_call(
        router_kernel,
        out_shape=jax.ShapeDtypeStruct((T, n_experts), jnp.float32),
        grid=(n_tiles,),
        in_specs=[pl.BlockSpec((tm, d_model), lambda i: (i, 0)),
                  pl.BlockSpec((d_model, n_experts), lambda i: (0, 0))],
        out_specs=pl.BlockSpec((tm, n_experts), lambda i: (i, 0)),
        compiler_params=pltpu.CompilerParams(
            dimension_semantics=("parallel",),
            vmem_limit_bytes=vmem_limit),
    )(x_bf, wsel_t)

    # --- entropy regularization on the tiny [T, E] logits (plain XLA) ---
    # reg = sum_e lme_e * exp(lme_e), lme = logmeanexp_tokens(log_softmax(sel))
    # (equals -entropy_l(log_mean(log_softmax(sel))).mean() in the module).
    logp = jax.nn.log_softmax(sel_raw, axis=-1)
    m = jnp.max(logp, axis=0)
    lme = m + jnp.log(jnp.sum(jnp.exp(logp - m), axis=0)) - jnp.log(float(T))
    reg_loss = jnp.sum(lme * jnp.exp(lme))

    # --- gating: sigmoid + top-k, laid out per-expert as [E, T, 1] ---
    # TODO(synk): top-k selection has no clean in-kernel Pallas equivalent;
    # lax.top_k matches torch.topk(sorted=False) up to tie-breaking.
    sel = jax.nn.sigmoid(sel_raw)
    sel_val, sel_idx = lax.top_k(sel, k)
    gate = jnp.sum(jax.nn.one_hot(sel_idx, n_experts, dtype=jnp.float32)
                   * sel_val[..., None], axis=-2)                  # [T, E]
    gate_ext = jnp.transpose(gate)[:, :, None]                     # [E, T, 1]

    # --- expert weights grouped along N, bf16, VMEM-resident in the kernel ---
    group = _pick_expert_group(n_experts, expert_size)
    n_groups = n_experts // group
    keys_g = jnp.transpose(
        keys.reshape(n_groups, group, d_model, expert_size),
        (0, 2, 1, 3)).reshape(n_groups, d_model, group * expert_size)
    keys_g = keys_g.astype(jnp.bfloat16)
    values_g = values.reshape(n_groups, group * expert_size, v_dim).astype(jnp.bfloat16)

    # TODO(synk): dense over all experts matches the module's fast-CPU math
    # path (mask * F.linear); a grouped GEMM over only the top-k tokens per
    # expert (sorted tokens + scalar-prefetched group offsets) would cut E/k of
    # the FLOPs.
    # TODO(synk): if E*(D*S+S*V) weights ever exceed the per-generation VMEM
    # budget, fall back to streaming expert groups over a reduction grid axis.
    out = pl.pallas_call(
        functools.partial(moe_kernel, group=group, expert_size=expert_size),
        out_shape=jax.ShapeDtypeStruct((T, v_dim), jnp.float32),
        grid=(n_tiles,),
        in_specs=[
            pl.BlockSpec((tm, d_model), lambda i: (i, 0)),
            pl.BlockSpec((n_groups, d_model, group * expert_size),
                         lambda i: (0, 0, 0)),                      # resident
            pl.BlockSpec((n_groups, group * expert_size, v_dim),
                         lambda i: (0, 0, 0)),                      # resident
            pl.BlockSpec((n_experts, tm, 1), lambda i: (0, i, 0)),  # gate
        ],
        out_specs=pl.BlockSpec((tm, v_dim), lambda i: (i, 0)),
        compiler_params=pltpu.CompilerParams(
            dimension_semantics=("parallel",),
            vmem_limit_bytes=vmem_limit),
    )(x_bf, keys_g, values_g, gate_ext)

    return out.reshape(bsz, seq, v_dim), reg_loss


# ----------------------------------------------------------------------------
# Pure-JAX f32 reference of the module's fast-CPU math path (for checking)
# ----------------------------------------------------------------------------
def _reference_forward(x, w_sel, keys, values, k):
    bsz, seq, d_model = x.shape
    n_experts = keys.shape[0]
    T = bsz * seq
    xf = x.reshape(T, d_model)
    sel_raw = xf @ w_sel.T
    pbar = jnp.mean(jax.nn.softmax(sel_raw, axis=-1), axis=0)      # mean softmax
    lme = jnp.log(pbar)
    reg = jnp.sum(lme * jnp.exp(lme))
    sel = jax.nn.sigmoid(sel_raw)
    sval, sidx = lax.top_k(sel, k)
    gate = jnp.sum(jax.nn.one_hot(sidx, n_experts, dtype=jnp.float32)
                   * sval[..., None], axis=-2)                      # [T, E]
    scores = jax.nn.relu(jnp.einsum("td,eds->tes", xf, keys))
    out = jnp.einsum("tes,esv->tv", scores * gate[:, :, None], values)
    return out.reshape(bsz, seq, -1), reg, sel_raw


if __name__ == "__main__":
    # Small, lane-friendly hyper-parameters consistent with SigmaMoELayer.
    d_model = 128
    n_experts = 8
    expert_size = 128
    top_k = 2
    v_dim = d_model
    bsz, seq = 2, 64                 # T = 128 tokens

    key = jax.random.PRNGKey(0)
    k1, k2, k3, k4 = jax.random.split(key, 4)
    # expert_sel.weight: [E, D]; keys: randn(E, D, S); values: randn(E, S, V).
    w_sel = 0.05 * jax.random.normal(k1, (n_experts, d_model), jnp.float32)
    keys_p = 0.05 * jax.random.normal(k2, (n_experts, d_model, expert_size), jnp.float32)
    values_p = 0.05 * jax.random.normal(k3, (n_experts, expert_size, v_dim), jnp.float32)
    x = jax.random.normal(k4, (bsz, seq, d_model), jnp.float32)

    res, reg_loss = sigma_moe_forward(x, w_sel, keys_p, values_p, top_k)
    res = jax.block_until_ready(res)
    reg_loss = jax.block_until_ready(reg_loss)

    assert res.shape == (bsz, seq, v_dim)
    assert reg_loss.shape == ()
    assert bool(jnp.all(jnp.isfinite(res))) and bool(jnp.isfinite(reg_loss))

    # Compare against the f32 reference evaluated on bf16-rounded inputs (the
    # kernel feeds the MXU in bf16), so the discrete top-k selection is
    # identical and the remaining delta is pure rounding noise.
    def _r(a):
        return a.astype(jnp.bfloat16).astype(jnp.float32)
    ref_out, ref_reg, _ = _reference_forward(_r(x), _r(w_sel), _r(keys_p),
                                             _r(values_p), top_k)
    assert float(jnp.max(jnp.abs(res - ref_out))) < 3e-2
    assert abs(float(reg_loss) - float(ref_reg)) < 2e-2

    print("KERNEL_OK")
</pallas_src>

<mosaic_0001>
module attributes {stable_mosaic.version = 11 : i64} {
  func.func @router_kernel(%arg0: i32, %arg1: memref<128x128xbf16, #tpu.memory_space<vmem>>, %arg2: memref<128x8xbf16, #tpu.memory_space<vmem>>, %arg3: memref<128x8xf32, #tpu.memory_space<vmem>>) attributes {dimension_semantics = [#tpu.dimension_semantics<parallel>], iteration_bounds = array<i64: 1>, scalar_prefetch = 0 : i64, scratch_operands = 0 : i64, tpu.core_type = #tpu.core_type<tc>, window_params = [{transform_indices = @transform_0, window_bounds = array<i64: 128, 128>}, {pipeline_mode = #tpu.pipeline_mode<synchronous>, transform_indices = @transform_1, window_bounds = array<i64: 128, 8>}, {transform_indices = @transform_2, window_bounds = array<i64: 128, 8>}]} {
    %c0 = arith.constant 0 : index
    %c0_0 = arith.constant 0 : index
    %0 = vector.load %arg1[%c0, %c0_0] : memref<128x128xbf16, #tpu.memory_space<vmem>>, vector<128x128xbf16>
    %c0_1 = arith.constant 0 : index
    %c0_2 = arith.constant 0 : index
    %1 = vector.load %arg2[%c0_1, %c0_2] : memref<128x8xbf16, #tpu.memory_space<vmem>>, vector<128x8xbf16>
    %cst = arith.constant dense<0.000000e+00> : vector<128x8xf32>
    %2 = tpu.matmul %0, %1, %cst {dimension_numbers = #tpu.dot_dimension_numbers<[1], [0], [0], [1], [0, 0, 1, 1], [], []>} : vector<128x128xbf16>, vector<128x8xbf16>, vector<128x8xf32> -> vector<128x8xf32>
    %c0_3 = arith.constant 0 : index
    %c0_4 = arith.constant 0 : index
    %3 = vector.load %arg3[%c0_3, %c0_4] : memref<128x8xf32, #tpu.memory_space<vmem>>, vector<128x8xf32>
    tpu.vector_store %arg3[%c0_3, %c0_4], %2 {strides = array<i32>} : memref<128x8xf32, #tpu.memory_space<vmem>>, vector<128x8xf32>,
    return
  }
  func.func @transform_0(%arg0: i32) -> (i32, i32) {
    %c0_i32 = arith.constant 0 : i32
    %c0_i32_0 = arith.constant 0 : i32
    return %arg0, %c0_i32 : i32, i32
  }
  func.func @transform_1(%arg0: i32) -> (i32, i32) {
    %c0_i32 = arith.constant 0 : i32
    %c0_i32_0 = arith.constant 0 : i32
    %c0_i32_1 = arith.constant 0 : i32
    return %c0_i32, %c0_i32_0 : i32, i32
  }
  func.func @transform_2(%arg0: i32) -> (i32, i32) {
    %c0_i32 = arith.constant 0 : i32
    %c0_i32_0 = arith.constant 0 : i32
    return %arg0, %c0_i32 : i32, i32
  }
}

</mosaic_0001>

<llo_original>
// kernel: tpu_custom_call.1
$region0: #{tpu_custom_call.1}
  #allocation0 [shape = 'u32[]', space=smem, size = 0x4, offset = 0x4, fixed_abs, tag = 'smem constant byte address 0x4 - core index']
  #allocation1 [shape = 'u32[144,128]{1,0:T(1,128)}', space=vmem, size = 0x12000, scoped, tag = 'internal scratch']
  %s0 = inlined_call_operand.vmem [shape: bf16[128,128], index: 0, kind: input, shape index: {}]
  %s1 = inlined_call_operand.vmem [shape: bf16[128,8], index: 1, kind: input, shape index: {}]
  %s2 = inlined_call_operand.vmem [shape: f32[128,8], index: 2, kind: output, shape index: {}]
  %s3 = sld [smem:[#allocation0]]
  $region18: #{tpu_custom_call.1} parent=0
    _
  %s5 = ssub.s32 1, %s3
  %s6 = scalar_select 0, %s5, %s3
  // Predicated region
  $region2: #{tpu_custom_call.1} parent=0 // pred_check
    _
  $region3: #{tpu_custom_call.1} parent=0 // pred_check_branch
    %8 = sbr.rel (0) target = $region5
  $region4: #{tpu_custom_call.1} parent=0 // pred_region
    _
  $region5: #{tpu_custom_call.1} parent=0 // pred_fallthru
    _
  // Predicated region
  $region6: #{tpu_custom_call.1} parent=0 // pred_check
    _
  $region7: #{tpu_custom_call.1} parent=0 // pred_check_branch
    %10 = sbr.rel (0) target = $region9
  $region8: #{tpu_custom_call.1} parent=0 // pred_region
    _
  $region9: #{tpu_custom_call.1} parent=0 // pred_fallthru
    _
  %v12 = vld [vmem:[%s0] sm:$0xf]
  %v13 = vld [vmem:[%s0 + $0x4] sm:$0xf]
  %v14 = vld [vmem:[%s0 + $0x8] sm:$0xf]
  %v15 = vld [vmem:[%s0 + $0xc] sm:$0xf]
  %v16 = vld [vmem:[%s0 + $0x10] sm:$0xf]
  %v17 = vld [vmem:[%s0 + $0x14] sm:$0xf]
  %v18 = vld [vmem:[%s0 + $0x18] sm:$0xf]
  %v19 = vld [vmem:[%s0 + $0x1c] sm:$0xf]
  %v20 = vld [vmem:[%s0 + $0x20] sm:$0xf]
  %v21 = vld [vmem:[%s0 + $0x24] sm:$0xf]
  %v22 = vld [vmem:[%s0 + $0x28] sm:$0xf]
  %v23 = vld [vmem:[%s0 + $0x2c] sm:$0xf]
  %v24 = vld [vmem:[%s0 + $0x30] sm:$0xf]
  %v25 = vld [vmem:[%s0 + $0x34] sm:$0xf]
  %v26 = vld [vmem:[%s0 + $0x38] sm:$0xf]
  %v27 = vld [vmem:[%s0 + $0x3c] sm:$0xf]
  %v28 = vld [vmem:[%s1] sm:$0xf]
  %v29 = vld [vmem:[%s1 + $0x4] sm:$0xf]
  %v30 = vld [vmem:[%s1 + $0x8] sm:$0xf]
  %v31 = vld [vmem:[%s1 + $0xc] sm:$0xf]
  %v32 = vld [vmem:[%s1 + $0x10] sm:$0xf]
  %v33 = vld [vmem:[%s1 + $0x14] sm:$0xf]
  %v34 = vld [vmem:[%s1 + $0x18] sm:$0xf]
  %v35 = vld [vmem:[%s1 + $0x1c] sm:$0xf]
  %v36 = vld [vmem:[%s1 + $0x20] sm:$0xf]
  %v37 = vld [vmem:[%s1 + $0x24] sm:$0xf]
  %v38 = vld [vmem:[%s1 + $0x28] sm:$0xf]
  %v39 = vld [vmem:[%s1 + $0x2c] sm:$0xf]
  %v40 = vld [vmem:[%s1 + $0x30] sm:$0xf]
  %v41 = vld [vmem:[%s1 + $0x34] sm:$0xf]
  %v42 = vld [vmem:[%s1 + $0x38] sm:$0xf]
  %v43 = vld [vmem:[%s1 + $0x3c] sm:$0xf]
  %v60 = vunpack.c.l.b16 %v12
  %v61 = vunpack.c.l.b16 %v13
  %v62 = vunpack.c.l.b16 %v14
  %v63 = vunpack.c.l.b16 %v15
  %v64 = vunpack.c.l.b16 %v16
  %v65 = vunpack.c.l.b16 %v17
  %v66 = vunpack.c.l.b16 %v18
  %v67 = vunpack.c.l.b16 %v19
  %v68 = vunpack.c.l.b16 %v20
  %v69 = vunpack.c.l.b16 %v21
  %v70 = vunpack.c.l.b16 %v22
  %v71 = vunpack.c.l.b16 %v23
  %v72 = vunpack.c.l.b16 %v24
  %v73 = vunpack.c.l.b16 %v25
  %v74 = vunpack.c.l.b16 %v26
  %v75 = vunpack.c.l.b16 %v27
  %v76 = vpack.c.b16 %v61, %v60
  %v77 = vpack.c.b16 %v63, %v62
  %v78 = vpack.c.b16 %v65, %v64
  %v79 = vpack.c.b16 %v67, %v66
  %v80 = vpack.c.b16 %v69, %v68
  %v81 = vpack.c.b16 %v71, %v70
  %v82 = vpack.c.b16 %v73, %v72
  %v83 = vpack.c.b16 %v75, %v74
  %v108 = vunpack.c.l.b16 %v28
  %v109 = vunpack.c.l.b16 %v29
  %v110 = vunpack.c.l.b16 %v30
  %v111 = vunpack.c.l.b16 %v31
  %v112 = vunpack.c.l.b16 %v32
  %v113 = vunpack.c.l.b16 %v33
  %v114 = vunpack.c.l.b16 %v34
  %v115 = vunpack.c.l.b16 %v35
  %v116 = vunpack.c.l.b16 %v36
  %v117 = vunpack.c.l.b16 %v37
  %v118 = vunpack.c.l.b16 %v38
  %v119 = vunpack.c.l.b16 %v39
  %v120 = vunpack.c.l.b16 %v40
  %v121 = vunpack.c.l.b16 %v41
  %v122 = vunpack.c.l.b16 %v42
  %v123 = vunpack.c.l.b16 %v43
  %v124 = vpack.c.b16 %v109, %v108
  %v125 = vpack.c.b16 %v111, %v110
  %v126 = vpack.c.b16 %v113, %v112
  %v127 = vpack.c.b16 %v115, %v114
  %v128 = vpack.c.b16 %v117, %v116
  %v129 = vpack.c.b16 %v119, %v118
  %v130 = vpack.c.b16 %v121, %v120
  %v131 = vpack.c.b16 %v123, %v122
  %140 = vmatprep.subr.bf16.mxu0 0
  %141 = vmatpush1.bf16.msra.mxu0 %v124
  %142 = vmatprep.subr.bf16.mxu0 0
  %143 = vmatpush1.bf16.msra.mxu0 %v125
  %144 = vmatprep.subr.bf16.mxu0 0
  %145 = vmatpush1.bf16.msra.mxu0 %v126
  %146 = vmatprep.subr.bf16.mxu0 0
  %147 = vmatpush1.bf16.msra.mxu0 %v127
  %148 = vmatprep.subr.bf16.mxu0 0
  %149 = vmatpush1.bf16.msra.mxu0 %v128
  %150 = vmatprep.subr.bf16.mxu0 0
  %151 = vmatpush1.bf16.msra.mxu0 %v129
  %152 = vmatprep.subr.bf16.mxu0 0
  %153 = vmatpush1.bf16.msra.mxu0 %v130
  %154 = vmatprep.subr.bf16.mxu0 0
  %155 = vmatpush1.bf16.msra.mxu0 %v131
  %156 = vmatprep.subr.bf16.mxu0 0
  %157 = vmatpush1.bf16.msra.mxu0 0
  %158 = vmatprep.subr.bf16.mxu0 0
  %159 = vmatpush1.bf16.msra.mxu0 0
  %160 = vmatprep.subr.bf16.mxu0 0
  %161 = vmatpush1.bf16.msra.mxu0 0
  %162 = vmatprep.subr.bf16.mxu0 0
  %163 = vmatpush1.bf16.msra.mxu0 0
  %164 = vmatprep.subr.bf16.mxu0 0
  %165 = vmatpush1.bf16.msra.mxu0 0
  %166 = vmatprep.subr.bf16.mxu0 0
  %167 = vmatpush1.bf16.msra.mxu0 0
  %168 = vmatprep.subr.bf16.mxu0 0
  %169 = vmatpush1.bf16.msra.mxu0 0
  %170 = vmatprep.subr.bf16.mxu0 0
  %171 = vmatpush1.bf16.msra.mxu0 0
  %172 = vmatprep.mubr.bf16.mxu0 0
  %173 = vmatmul.mubr.bf16.gmra.mrb[0].mxu0 %v76
  %v174 = vpop.f32.mrb[0].mxu0
  %v175 = vadd.f32 0.0, %v174
  %v176 = vpop.f32.mrb[0].mxu0
  %v177 = vpop.f32.mrb[0].mxu0
  %v178 = vadd.f32 0.0, %v177
  %v179 = vpop.f32.mrb[0].mxu0
  %180 = vmatprep.mubr.bf16.mxu0 0
  %181 = vmatmul.mubr.bf16.gmra.mrb[0].mxu0 %v77
  %v182 = vpop.f32.mrb[0].mxu0
  %v183 = vadd.f32 0.0, %v182
  %v184 = vpop.f32.mrb[0].mxu0
  %v185 = vpop.f32.mrb[0].mxu0
  %v186 = vadd.f32 0.0, %v185
  %v187 = vpop.f32.mrb[0].mxu0
  %188 = vmatprep.mubr.bf16.mxu0 0
  %189 = vmatmul.mubr.bf16.gmra.mrb[0].mxu0 %v78
  %v190 = vpop.f32.mrb[0].mxu0
  %v191 = vadd.f32 0.0, %v190
  %v192 = vpop.f32.mrb[0].mxu0
  %v193 = vpop.f32.mrb[0].mxu0
  %v194 = vadd.f32 0.0, %v193
  %v195 = vpop.f32.mrb[0].mxu0
  %196 = vmatprep.mubr.bf16.mxu0 0
  %197 = vmatmul.mubr.bf16.gmra.mrb[0].mxu0 %v79
  %v198 = vpop.f32.mrb[0].mxu0
  %v199 = vadd.f32 0.0, %v198
  %v200 = vpop.f32.mrb[0].mxu0
  %v201 = vpop.f32.mrb[0].mxu0
  %v202 = vadd.f32 0.0, %v201
  %v203 = vpop.f32.mrb[0].mxu0
  %204 = vmatprep.mubr.bf16.mxu0 0
  %205 = vmatmul.mubr.bf16.gmra.mrb[0].mxu0 %v80
  %v206 = vpop.f32.mrb[0].mxu0
  %v207 = vadd.f32 0.0, %v206
  %v208 = vpop.f32.mrb[0].mxu0
  %v209 = vpop.f32.mrb[0].mxu0
  %v210 = vadd.f32 0.0, %v209
  %v211 = vpop.f32.mrb[0].mxu0
  %212 = vmatprep.mubr.bf16.mxu0 0
  %213 = vmatmul.mubr.bf16.gmra.mrb[0].mxu0 %v81
  %v214 = vpop.f32.mrb[0].mxu0
  %v215 = vadd.f32 0.0, %v214
  %v216 = vpop.f32.mrb[0].mxu0
  %v217 = vpop.f32.mrb[0].mxu0
  %v218 = vadd.f32 0.0, %v217
  %v219 = vpop.f32.mrb[0].mxu0
  %220 = vmatprep.mubr.bf16.mxu0 0
  %221 = vmatmul.mubr.bf16.gmra.mrb[0].mxu0 %v82
  %v222 = vpop.f32.mrb[0].mxu0
  %v223 = vadd.f32 0.0, %v222
  %v224 = vpop.f32.mrb[0].mxu0
  %v225 = vpop.f32.mrb[0].mxu0
  %v226 = vadd.f32 0.0, %v225
  %v227 = vpop.f32.mrb[0].mxu0
  %228 = vmatprep.mubr.bf16.mxu0 0
  %229 = vmatmul.mubr.bf16.gmra.mrb[0].mxu0 %v83
  %v230 = vpop.f32.mrb[0].mxu0
  %v231 = vadd.f32 0.0, %v230
  %v232 = vpop.f32.mrb[0].mxu0
  %v233 = vpop.f32.mrb[0].mxu0
  %v234 = vadd.f32 0.0, %v233
  %v235 = vpop.f32.mrb[0].mxu0
  %236 = vdwg.mxu0
  %vm237 = vcmask 64512
  %238 = vst.msk [vmem:[%s2] sm:$0xff] %vm237, %v175
  %239 = vst.msk [vmem:[%s2 + $0x8] sm:$0xff] %vm237, %v178
  %240 = vst.msk [vmem:[%s2 + $0x10] sm:$0xff] %vm237, %v183
  %241 = vst.msk [vmem:[%s2 + $0x18] sm:$0xff] %vm237, %v186
  %242 = vst.msk [vmem:[%s2 + $0x20] sm:$0xff] %vm237, %v191
  %243 = vst.msk [vmem:[%s2 + $0x28] sm:$0xff] %vm237, %v194
  %244 = vst.msk [vmem:[%s2 + $0x30] sm:$0xff] %vm237, %v199
  %245 = vst.msk [vmem:[%s2 + $0x38] sm:$0xff] %vm237, %v202
  %246 = vst.msk [vmem:[%s2 + $0x40] sm:$0xff] %vm237, %v207
  %247 = vst.msk [vmem:[%s2 + $0x48] sm:$0xff] %vm237, %v210
  %248 = vst.msk [vmem:[%s2 + $0x50] sm:$0xff] %vm237, %v215
  %249 = vst.msk [vmem:[%s2 + $0x58] sm:$0xff] %vm237, %v218
  %250 = vst.msk [vmem:[%s2 + $0x60] sm:$0xff] %vm237, %v223
  %251 = vst.msk [vmem:[%s2 + $0x68] sm:$0xff] %vm237, %v226
  %252 = vst.msk [vmem:[%s2 + $0x70] sm:$0xff] %vm237, %v231
  %253 = vst.msk [vmem:[%s2 + $0x78] sm:$0xff] %vm237, %v234
  // Predicated region
  $region10: #{tpu_custom_call.1} parent=0 // pred_check
    _
  $region11: #{tpu_custom_call.1} parent=0 // pred_check_branch
    %255 = sbr.rel (0) target = $region13
  $region12: #{tpu_custom_call.1} parent=0 // pred_region
    _
  $region13: #{tpu_custom_call.1} parent=0 // pred_fallthru
    _
  // Predicated region
  $region14: #{tpu_custom_call.1} parent=0 // pred_check
    _
  $region15: #{tpu_custom_call.1} parent=0 // pred_check_branch
    %257 = sbr.rel (0) target = $region17
  $region16: #{tpu_custom_call.1} parent=0 // pred_region
    _
  $region17: #{tpu_custom_call.1} parent=0 // pred_fallthru
    _

</llo_original>
